<compile_context>
chip_gen: v6e
topology: v6e:2x2x1
jax: 0.10.0
libtpu: 0.0.40
codegen_flags: <defaults>
</compile_context>

<pallas_src>
import jax
import jax.numpy as jnp
from jax import lax
from jax.experimental import pallas as pl
from jax.experimental.pallas import tpu as pltpu  # noqa: F401  (imported per convention)


def linear_add_kernel(x_ref, wb_ref, other_ref, o_ref):
    x = x_ref[...]                     # (B, F_in)
    f_in = x.shape[1]

    w = wb_ref[0:f_in, :]              # (F_in, F_out)  == W^T (packed rows 0..F_in-1)
    b = wb_ref[f_in:f_in + 1, :]       # (1, F_out)     == bias row (sublane slice)
    other = other_ref[...]             # (1, F_out) or (B, F_out); broadcasts over rows

    # Single MXU matmul, f32 accumulate.  Contracts x's feature dim against the
    # packed matrix's row dim -> y = x @ W^T, no transposes anywhere.
    y = lax.dot_general(
        x, w,
        dimension_numbers=(((1,), (0,)), ((), ())),
        preferred_element_type=jnp.float32,
    )                                  # (B, F_out)

    o_ref[...] = (y + b + other).astype(o_ref.dtype)


def pack_linear_params(weight, bias):
    """Pack torch-layout Linear params once (outside the kernel call path).

    weight: (F_out, F_in) torch layout, bias: (F_out,)
    returns wb: (F_in + 1, F_out) with wb[:F_in] = W^T, wb[F_in] = bias.
    """
    f_out, f_in = weight.shape
    assert bias.shape == (f_out,), bias.shape
    return jnp.concatenate([weight.T, bias[None, :]], axis=0)


def linear_add(x1, wb, other):
    """x1: (B, F_in), wb: (F_in+1, F_out) packed params, other: (1|B, F_out)."""
    B, F_in = x1.shape
    F_in_p1, F_out = wb.shape
    assert F_in_p1 == F_in + 1, (x1.shape, wb.shape)
    assert other.ndim == 2 and other.shape[1] == F_out and other.shape[0] in (1, B), other.shape

    # Gridless single-block call: default full-array blocks, everything in VMEM.
    # TODO(synk): if B is ever scaled up, add a 1-D grid over B-tiles with
    # dimension_semantics=("parallel",) to use both TensorCores on v7x.
    return pl.pallas_call(
        linear_add_kernel,
        out_shape=jax.ShapeDtypeStruct((B, F_out), x1.dtype),
    )(x1, wb, other)


if __name__ == "__main__":
    key = jax.random.PRNGKey(0)
    k_x, k_o, k_w, k_b = jax.random.split(key, 4)

    B, F = 1, 4  # shapes from the PyTorch spec: x1=(1,4), other=(1,4), Linear(4,4)
    x1 = jax.random.normal(k_x, (B, F), dtype=jnp.float32)
    other = jax.random.normal(k_o, (1, F), dtype=jnp.float32)

    # Deterministic parameter init (PyTorch Linear default: U(-1/sqrt(F_in), 1/sqrt(F_in)))
    bound = 1.0 / (F ** 0.5)
    weight = jax.random.uniform(k_w, (F, F), minval=-bound, maxval=bound,
                                dtype=jnp.float32)  # torch-style (F_out, F_in)
    bias = jax.random.uniform(k_b, (F,), minval=-bound, maxval=bound,
                              dtype=jnp.float32)

    # Pack W/b once at init time (constant params) -> one fewer DMA per call.
    wb = pack_linear_params(weight, bias)

    out = linear_add(x1, wb, other)
    jax.block_until_ready(out)

    # Reference check in plain JAX
    ref = x1 @ weight.T + bias + other
    assert jnp.allclose(out, ref, atol=1e-5, rtol=1e-5), (out, ref)

    print("KERNEL_OK")
</pallas_src>

<mosaic_0001>
module attributes {stable_mosaic.version = 11 : i64} {
  func.func @linear_add_kernel(%arg0: memref<1x4xf32, #tpu.memory_space<vmem>>, %arg1: memref<5x4xf32, #tpu.memory_space<vmem>>, %arg2: memref<1x4xf32, #tpu.memory_space<vmem>>, %arg3: memref<1x4xf32, #tpu.memory_space<vmem>>) attributes {dimension_semantics = [], scalar_prefetch = 0 : i64, scratch_operands = 0 : i64, tpu.core_type = #tpu.core_type<tc>} {
    %c0 = arith.constant 0 : index
    %c0_0 = arith.constant 0 : index
    %0 = vector.load %arg0[%c0, %c0_0] : memref<1x4xf32, #tpu.memory_space<vmem>>, vector<1x4xf32>
    %c0_1 = arith.constant 0 : index
    %c0_2 = arith.constant 0 : index
    %1 = vector.load %arg1[%c0_1, %c0_2] : memref<5x4xf32, #tpu.memory_space<vmem>>, vector<4x4xf32>
    %c4 = arith.constant 4 : index
    %c0_3 = arith.constant 0 : index
    %2 = vector.load %arg1[%c4, %c0_3] : memref<5x4xf32, #tpu.memory_space<vmem>>, vector<1x4xf32>
    %c0_4 = arith.constant 0 : index
    %c0_5 = arith.constant 0 : index
    %3 = vector.load %arg2[%c0_4, %c0_5] : memref<1x4xf32, #tpu.memory_space<vmem>>, vector<1x4xf32>
    %cst = arith.constant dense<0.000000e+00> : vector<1x4xf32>
    %4 = tpu.matmul %0, %1, %cst {dimension_numbers = #tpu.dot_dimension_numbers<[1], [0], [0], [1], [0, 0, 1, 1], [], []>} : vector<1x4xf32>, vector<4x4xf32>, vector<1x4xf32> -> vector<1x4xf32>
    %5 = arith.addf %4, %2 : vector<1x4xf32>
    %6 = arith.addf %5, %3 : vector<1x4xf32>
    %c0_6 = arith.constant 0 : index
    %c0_7 = arith.constant 0 : index
    %7 = vector.load %arg3[%c0_6, %c0_7] : memref<1x4xf32, #tpu.memory_space<vmem>>, vector<1x4xf32>
    tpu.vector_store %arg3[%c0_6, %c0_7], %6 {strides = array<i32>} : memref<1x4xf32, #tpu.memory_space<vmem>>, vector<1x4xf32>,
    return
  }
}

</mosaic_0001>

<llo_original>
// kernel: tpu_custom_call.1
$region0: #{tpu_custom_call.1}
  #allocation0 [shape = 'u32[]', space=smem, size = 0x4, offset = 0x4, fixed_abs, tag = 'smem constant byte address 0x4 - core index']
  #allocation1 [shape = 'u32[144,128]{1,0:T(1,128)}', space=vmem, size = 0x12000, scoped, tag = 'internal scratch']
  %s0 = inlined_call_operand.vmem [shape: f32[1,4], index: 0, kind: input, shape index: {}]
  %s1 = inlined_call_operand.vmem [shape: f32[5,4], index: 1, kind: input, shape index: {}]
  %s2 = inlined_call_operand.vmem [shape: f32[1,4], index: 2, kind: input, shape index: {}]
  %s3 = inlined_call_operand.hbm [shape: f32[1,4], index: 3, kind: output, shape index: {}]
  %s4 = sld [smem:[#allocation0]]
  $region22: #{tpu_custom_call.1} parent=0
    _
  %s6 = ssub.s32 1, %s4
  %s7 = scalar_select 0, %s6, %s4
  $region1: #{tpu_custom_call.1} parent=0
    #allocation2 [shape = 'u8[512]{0}', space=vmem, size = 0x400, scoped, tag = 'output window, operand 0, single buffered']
    #allocation3 [shape = 's32[1]{0}', space=sflag, size = 0x4, scoped, tag = 'scoped memory for tpu_custom_call.1']
    %8 = vsyncpa [#allocation3], 0
    // Predicated region
    $region2: #{tpu_custom_call.1} parent=1 // pred_check
      _
    $region3: #{tpu_custom_call.1} parent=1 // pred_check_branch
      %10 = sbr.rel (0) target = $region5
    $region4: #{tpu_custom_call.1} parent=1 // pred_region
      _
    $region5: #{tpu_custom_call.1} parent=1 // pred_fallthru
      _
    // Predicated region
    $region6: #{tpu_custom_call.1} parent=1 // pred_check
      _
    $region7: #{tpu_custom_call.1} parent=1 // pred_check_branch
      %12 = sbr.rel (0) target = $region9
    $region8: #{tpu_custom_call.1} parent=1 // pred_region
      _
    $region9: #{tpu_custom_call.1} parent=1 // pred_fallthru
      _
    // Predicated region
    $region10: #{tpu_custom_call.1} parent=1 // pred_check
      _
    $region11: #{tpu_custom_call.1} parent=1 // pred_check_branch
      %14 = sbr.rel (0) target = $region13
    $region12: #{tpu_custom_call.1} parent=1 // pred_region
      _
    $region13: #{tpu_custom_call.1} parent=1 // pred_fallthru
      _
    %v15 = vld [vmem:[%s0] sm:$0x1]
    %v16 = vld [vmem:[%s1] sm:$0xf]
    %v17 = vld [vmem:[%s1 + $0x4] sm:$0x1]
    %v18 = vld [vmem:[%s2] sm:$0x1]
    %vm19 = vcmask 31744
    %v21 = vsel %vm19, %v15, 0
    %vm23 = vcmask 1043456
    %v25 = vsel %vm23, %v16, 0
    %27 = vmatprep.subr.mxu0 0.0
    %28 = vmatpush1.msra.mxu0 0.0
    %29 = vmatprep.subr.mxu0 0.0
    %30 = vmatpush1.msra.mxu0 0.0
    %31 = vmatprep.subr.mxu0 0.0
    %32 = vmatpush1.msra.mxu0 0.0
    %33 = vmatprep.subr.mxu0 0.0
    %34 = vmatpush1.msra.mxu0 0.0
    %35 = vmatprep.subr.mxu0 0.0
    %36 = vmatpush1.msra.mxu0 0.0
    %37 = vmatprep.subr.mxu0 0.0
    %38 = vmatpush1.msra.mxu0 0.0
    %39 = vmatprep.subr.mxu0 0.0
    %40 = vmatpush1.msra.mxu0 0.0
    %41 = vmatprep.subr.mxu0 0.0
    %42 = vmatpush1.msra.mxu0 0.0
    %43 = vmatprep.subr.mxu0 0.0
    %44 = vmatpush1.msra.mxu0 0.0
    %45 = vmatprep.subr.mxu0 0.0
    %46 = vmatpush1.msra.mxu0 0.0
    %47 = vmatprep.subr.mxu0 0.0
    %48 = vmatpush1.msra.mxu0 0.0
    %49 = vmatprep.subr.mxu0 0.0
    %50 = vmatpush1.msra.mxu0 0.0
    %51 = vmatprep.subr.mxu0 0.0
    %52 = vmatpush1.msra.mxu0 0.0
    %53 = vmatprep.subr.mxu0 0.0
    %54 = vmatpush1.msra.mxu0 0.0
    %55 = vmatprep.subr.mxu0 0.0
    %56 = vmatpush1.msra.mxu0 0.0
    %57 = vmatprep.subr.mxu0 0.0
    %58 = vmatpush1.msra.mxu0 %v25
    %59 = vmatprep.subr.mxu0 0.0
    %60 = vmatpush2.msra.mxu0 0.0
    %61 = vmatprep.subr.mxu0 0.0
    %62 = vmatpush2.msra.mxu0 0.0
    %63 = vmatprep.subr.mxu0 0.0
    %64 = vmatpush2.msra.mxu0 0.0
    %65 = vmatprep.subr.mxu0 0.0
    %66 = vmatpush2.msra.mxu0 0.0
    %67 = vmatprep.subr.mxu0 0.0
    %68 = vmatpush2.msra.mxu0 0.0
    %69 = vmatprep.subr.mxu0 0.0
    %70 = vmatpush2.msra.mxu0 0.0
    %71 = vmatprep.subr.mxu0 0.0
    %72 = vmatpush2.msra.mxu0 0.0
    %73 = vmatprep.subr.mxu0 0.0
    %74 = vmatpush2.msra.mxu0 0.0
    %75 = vmatprep.subr.mxu0 0.0
    %76 = vmatpush2.msra.mxu0 0.0
    %77 = vmatprep.subr.mxu0 0.0
    %78 = vmatpush2.msra.mxu0 0.0
    %79 = vmatprep.subr.mxu0 0.0
    %80 = vmatpush2.msra.mxu0 0.0
    %81 = vmatprep.subr.mxu0 0.0
    %82 = vmatpush2.msra.mxu0 0.0
    %83 = vmatprep.subr.mxu0 0.0
    %84 = vmatpush2.msra.mxu0 0.0
    %85 = vmatprep.subr.mxu0 0.0
    %86 = vmatpush2.msra.mxu0 0.0
    %87 = vmatprep.subr.mxu0 0.0
    %88 = vmatpush2.msra.mxu0 0.0
    %89 = vmatprep.subr.mxu0 0.0
    %90 = vmatpush2.msra.mxu0 0.0
    %91 = vmatprep.mubr.f32.mxu0 0.0
    %92 = vmatmul.mubr.f32.gmra.mxu0 %v21
    %v93 = vpop.f32.mrf.mxu0
    %v94 = vadd.f32 %v17, %v93
    %v95 = vpop.f32.mrf.mxu0
    %96 = vdwg.mxu0
    %v97 = vadd.f32 %v94, %v18
    %vm98 = vcmask 24576
    %99 = vst.msk [vmem:[#allocation2] sm:$0x1] %vm98, %v97
    // Predicated region
    $region14: #{tpu_custom_call.1} parent=1 // pred_check
      _
    $region15: #{tpu_custom_call.1} parent=1 // pred_check_branch
      %101 = sbr.rel (0) target = $region17
    $region16: #{tpu_custom_call.1} parent=1 // pred_region
      %s103 = ssub.s32 16, 16
      %104 = vsyncadd [#allocation3], %s103
      %s106 = sshll.u32 [#allocation2], 4
      %s107 = int_to_ptr.vmem [resolvable:$true] %s106
      %109 = dma.vmem_to_hbm [thread:$0]  %s107, 16, %s3, [#allocation3]
    $region17: #{tpu_custom_call.1} parent=1 // pred_fallthru
      _
    // Predicated region
    $region18: #{tpu_custom_call.1} parent=1 // pred_check
      _
    $region19: #{tpu_custom_call.1} parent=1 // pred_check_branch
      %111 = sbr.rel (0) target = $region21
    $region20: #{tpu_custom_call.1} parent=1 // pred_region
      %112 = dma.done [#allocation3], 16
    $region21: #{tpu_custom_call.1} parent=1 // pred_fallthru
      _
    %113 = vsyncpa [#allocation3], 1

</llo_original>
